<compile_context>
chip_gen: v7x
topology: tpu7x:2x2x1
jax: 0.10.0
libtpu: 0.0.40
codegen_flags: <defaults>
</compile_context>

<pallas_src>
import functools

import jax
import jax.numpy as jnp
from jax.experimental import pallas as pl
from jax.experimental.pallas import tpu as pltpu


def _round_up(x, m):
    return (x + m - 1) // m * m


def rcab_kernel(x_ref, mask_ref, w1_ref, b1_ref, w2_ref, b2_ref,
                wd1_ref, bd1_ref, wd2_ref, bd2_ref, o_ref, *, H, W):
    Wp = W + 2                       # padded width
    FS = H * Wp                      # flattened output grid size (padded width)
    SP = x_ref.shape[2]              # flattened padded frame, rounded to 128
    off0 = Wp + 1                    # offset of pixel (0,0) inside the frame
    inv_hw = 1.0 / float(H * W)

    x = x_ref[0]                     # (C, SP) f32  flattened zero-padded frame
    mask = mask_ref[...]             # (1, SP) f32  1.0 on valid output columns

    def shift_cols(v, delta):
        # r[:, m] = v[:, (m + delta) mod SP]  (lane rotation on the XLU)
        d = (-delta) % SP
        return pltpu.roll(v, d, 1) if d else v

    def conv3x3(act, w_ref, b_ref, base):
        # Fused im2col: the 9 taps are lane rotations of `act`, stacked along
        # sublanes, then one (C, 9C) x (9C, SP) bf16 MXU contraction (f32 acc).
        taps = [shift_cols(act, ky * Wp + kx - base)
                for ky in range(3) for kx in range(3)]
        col = jnp.concatenate(taps, axis=0).astype(jnp.bfloat16)    # (9C, SP)
        acc = jnp.dot(w_ref[...], col, preferred_element_type=jnp.float32)
        return acc + b_ref[...]                                     # (C, SP) f32

    # conv -> ReLU   (x is already the zero-padded frame => tap base 0)
    h1 = conv3x3(x, w1_ref, b1_ref, base=0)
    h1 = jnp.maximum(h1, 0.0) * mask          # zero wrap-around / pad columns

    # second conv: the implicit zero re-padding of h1 is folded into the tap
    # shifts (base = off0); the mask above supplies the zeros.
    h2 = conv3x3(h1, w2_ref, b2_ref, base=off0)                     # (C, SP)

    # CALayer: masked global average pool + squeeze/excite on VPU/XLU.
    pooled = jnp.sum(h2 * mask, axis=1, keepdims=True) * inv_hw     # (C, 1)
    z = jnp.sum(wd1_ref[...] * pooled, axis=0, keepdims=True) + bd1_ref[...]
    z = jnp.maximum(z, 0.0)                                         # (1, C//r)
    s = jnp.sum(wd2_ref[...] * z, axis=1, keepdims=True) + bd2_ref[...]
    s = jax.nn.sigmoid(s)                                           # (C, 1)

    # channel gate + residual (x re-aligned from frame to output-grid columns)
    x_res = shift_cols(x, off0)                                     # (C, SP)
    o_ref[0] = h2 * s + x_res


def rcab_forward(x_nchw, params):
    """Pallas RCAB forward.  x_nchw: (N, C, H, W) float32, returns same shape."""
    w1, b1, w2, b2, wd1, bd1, wd2, bd2 = params
    N, C, H, W = x_nchw.shape
    Cr = wd1.shape[0]
    Hp, Wp = H + 2, W + 2
    FS = H * Wp
    SP = _round_up(Hp * Wp, 128)

    # Pre-pad the spatial dims once (XLA pad in HBM) and flatten the padded grid
    # onto the last (lane) axis, tail-padded with zeros up to a lane multiple.
    x = x_nchw.astype(jnp.float32)
    xf = jnp.pad(x, ((0, 0), (0, 0), (1, 1), (1, 1))).reshape(N, C, Hp * Wp)
    xf = jnp.pad(xf, ((0, 0), (0, 0), (0, SP - Hp * Wp)))

    # 1.0 on columns that correspond to a valid output pixel.
    col = jnp.arange(SP, dtype=jnp.int32)
    mask = ((col < FS) & (col % Wp < W)).astype(jnp.float32).reshape(1, SP)

    # Conv2d weights (C_out, C_in, 3, 3) -> tap-major (C_out, 9*C_in), bf16 for
    # the MXU (accumulation and all elementwise math stay f32 in the kernel).
    def pack_conv(w):
        return jnp.transpose(w, (0, 2, 3, 1)).reshape(C, 9 * C).astype(jnp.bfloat16)

    w1p, w2p = pack_conv(w1), pack_conv(w2)
    b1p = b1.reshape(C, 1).astype(jnp.float32)
    b2p = b2.reshape(C, 1).astype(jnp.float32)
    wd1p = jnp.transpose(wd1[:, :, 0, 0], (1, 0)).astype(jnp.float32)   # (C, Cr)
    wd2p = wd2[:, :, 0, 0].astype(jnp.float32)                          # (C, Cr)
    bd1p = bd1.reshape(1, Cr).astype(jnp.float32)
    bd2p = bd2.reshape(C, 1).astype(jnp.float32)

    def full(a):
        return pl.BlockSpec(a.shape, lambda n: (0, 0))

    kernel = functools.partial(rcab_kernel, H=H, W=W)
    out_flat = pl.pallas_call(
        kernel,
        out_shape=jax.ShapeDtypeStruct((N, C, SP), jnp.float32),
        grid=(N,),
        in_specs=[
            pl.BlockSpec((1, C, SP), lambda n: (n, 0, 0)),
            full(mask),
            full(w1p), full(b1p), full(w2p), full(b2p),
            full(wd1p), full(bd1p), full(wd2p), full(bd2p),
        ],
        out_specs=pl.BlockSpec((1, C, SP), lambda n: (n, 0, 0)),
        compiler_params=pltpu.CompilerParams(dimension_semantics=("parallel",)),
    )(xf, mask, w1p, b1p, w2p, b2p, wd1p, bd1p, wd2p, bd2p)

    # Crop the valid H x W region (kernel store stays lane-dense; cheap XLA slice).
    return out_flat[:, :, :FS].reshape(N, C, H, Wp)[:, :, :, :W]


def rcab_reference(x_nchw, params):
    """Pure-JAX reference mirroring the PyTorch module (NCHW)."""
    w1, b1, w2, b2, wd1, bd1, wd2, bd2 = params

    def conv(x, w, b):
        y = jax.lax.conv_general_dilated(
            x, w, window_strides=(1, 1), padding='SAME',
            dimension_numbers=('NCHW', 'OIHW', 'NCHW'))
        return y + b[None, :, None, None]

    h = jax.nn.relu(conv(x_nchw, w1, b1))
    h2 = conv(h, w2, b2)
    y = jnp.mean(h2, axis=(2, 3), keepdims=True)                    # AdaptiveAvgPool2d(1)
    y = jax.nn.relu(conv(y, wd1, bd1))
    y = jax.nn.sigmoid(conv(y, wd2, bd2))
    return h2 * y + x_nchw


def init_params(key, n_feat, reduction, kernel_size=3):
    C, Cr, K = n_feat, n_feat // reduction, kernel_size
    ks = jax.random.split(key, 8)

    def u(k, shape, fan_in):
        bound = 1.0 / jnp.sqrt(float(fan_in))
        return jax.random.uniform(k, shape, jnp.float32, -bound, bound)

    w1 = u(ks[0], (C, C, K, K), C * K * K)
    b1 = u(ks[1], (C,), C * K * K)
    w2 = u(ks[2], (C, C, K, K), C * K * K)
    b2 = u(ks[3], (C,), C * K * K)
    wd1 = u(ks[4], (Cr, C, 1, 1), C)
    bd1 = u(ks[5], (Cr,), C)
    wd2 = u(ks[6], (C, Cr, 1, 1), Cr)
    bd2 = u(ks[7], (C,), Cr)
    return (w1, b1, w2, b2, wd1, bd1, wd2, bd2)


if __name__ == "__main__":
    # RCAB(conv=default_conv, n_feat=16, kernel_size=3, reduction=4)
    N, C, H, W = 2, 16, 16, 16
    key = jax.random.PRNGKey(0)
    k_param, k_x = jax.random.split(key)
    params = init_params(k_param, n_feat=C, reduction=4, kernel_size=3)
    x = jax.random.normal(k_x, (N, C, H, W), jnp.float32)

    out = jax.block_until_ready(rcab_forward(x, params))
    ref = rcab_reference(x, params)
    assert out.shape == ref.shape == (N, C, H, W)
    # bf16 MXU operands (f32 accumulation) => slightly looser atol than pure f32.
    assert jnp.allclose(out, ref, rtol=1e-2, atol=2e-2), (
        float(jnp.max(jnp.abs(out - ref))))

    print("KERNEL_OK")
</pallas_src>

<mosaic_0001>
module attributes {stable_mosaic.version = 11 : i64} {
  func.func @rcab_kernel(%arg0: i32, %arg1: memref<1x16x384xf32, #tpu.memory_space<vmem>>, %arg2: memref<1x384xf32, #tpu.memory_space<vmem>>, %arg3: memref<16x144xbf16, #tpu.memory_space<vmem>>, %arg4: memref<16x1xf32, #tpu.memory_space<vmem>>, %arg5: memref<16x144xbf16, #tpu.memory_space<vmem>>, %arg6: memref<16x1xf32, #tpu.memory_space<vmem>>, %arg7: memref<16x4xf32, #tpu.memory_space<vmem>>, %arg8: memref<1x4xf32, #tpu.memory_space<vmem>>, %arg9: memref<16x4xf32, #tpu.memory_space<vmem>>, %arg10: memref<16x1xf32, #tpu.memory_space<vmem>>, %arg11: memref<1x16x384xf32, #tpu.memory_space<vmem>>) attributes {dimension_semantics = [#tpu.dimension_semantics<parallel>], iteration_bounds = array<i64: 2>, scalar_prefetch = 0 : i64, scratch_operands = 0 : i64, tpu.core_type = #tpu.core_type<tc>, window_params = [{transform_indices = @transform_0, window_bounds = array<i64: 1, 16, 384>}, {pipeline_mode = #tpu.pipeline_mode<synchronous>, transform_indices = @transform_1, window_bounds = array<i64: 1, 384>}, {pipeline_mode = #tpu.pipeline_mode<synchronous>, transform_indices = @transform_2, window_bounds = array<i64: 16, 144>}, {pipeline_mode = #tpu.pipeline_mode<synchronous>, transform_indices = @transform_3, window_bounds = array<i64: 16, 1>}, {pipeline_mode = #tpu.pipeline_mode<synchronous>, transform_indices = @transform_4, window_bounds = array<i64: 16, 144>}, {pipeline_mode = #tpu.pipeline_mode<synchronous>, transform_indices = @transform_5, window_bounds = array<i64: 16, 1>}, {pipeline_mode = #tpu.pipeline_mode<synchronous>, transform_indices = @transform_6, window_bounds = array<i64: 16, 4>}, {pipeline_mode = #tpu.pipeline_mode<synchronous>, transform_indices = @transform_7, window_bounds = array<i64: 1, 4>}, {pipeline_mode = #tpu.pipeline_mode<synchronous>, transform_indices = @transform_8, window_bounds = array<i64: 16, 4>}, {pipeline_mode = #tpu.pipeline_mode<synchronous>, transform_indices = @transform_9, window_bounds = array<i64: 16, 1>}, {transform_indices = @transform_10, window_bounds = array<i64: 1, 16, 384>}]} {
    %c0 = arith.constant 0 : index
    %c0_0 = arith.constant 0 : index
    %c0_1 = arith.constant 0 : index
    %0 = vector.load %arg1[%c0, %c0_0, %c0_1] : memref<1x16x384xf32, #tpu.memory_space<vmem>>, vector<1x16x384xf32>
    %1 = vector.shape_cast %0 : vector<1x16x384xf32> to vector<16x384xf32>
    %c0_2 = arith.constant 0 : index
    %c0_3 = arith.constant 0 : index
    %2 = vector.load %arg2[%c0_2, %c0_3] : memref<1x384xf32, #tpu.memory_space<vmem>>, vector<1x384xf32>
    %c383_i32 = arith.constant 383 : i32
    %3 = tpu.dynamic_rotate %1 by %c383_i32 dim 1 : vector<16x384xf32>, i32 -> vector<16x384xf32>
    %c382_i32 = arith.constant 382 : i32
    %4 = tpu.dynamic_rotate %1 by %c382_i32 dim 1 : vector<16x384xf32>, i32 -> vector<16x384xf32>
    %c366_i32 = arith.constant 366 : i32
    %5 = tpu.dynamic_rotate %1 by %c366_i32 dim 1 : vector<16x384xf32>, i32 -> vector<16x384xf32>
    %c365_i32 = arith.constant 365 : i32
    %6 = tpu.dynamic_rotate %1 by %c365_i32 dim 1 : vector<16x384xf32>, i32 -> vector<16x384xf32>
    %c364_i32 = arith.constant 364 : i32
    %7 = tpu.dynamic_rotate %1 by %c364_i32 dim 1 : vector<16x384xf32>, i32 -> vector<16x384xf32>
    %c348_i32 = arith.constant 348 : i32
    %8 = tpu.dynamic_rotate %1 by %c348_i32 dim 1 : vector<16x384xf32>, i32 -> vector<16x384xf32>
    %c347_i32 = arith.constant 347 : i32
    %9 = tpu.dynamic_rotate %1 by %c347_i32 dim 1 : vector<16x384xf32>, i32 -> vector<16x384xf32>
    %c346_i32 = arith.constant 346 : i32
    %10 = tpu.dynamic_rotate %1 by %c346_i32 dim 1 : vector<16x384xf32>, i32 -> vector<16x384xf32>
    %11 = tpu.concatenate %1, %3, %4, %5, %6, %7, %8, %9, %10 in 0 : vector<16x384xf32>, vector<16x384xf32>, vector<16x384xf32>, vector<16x384xf32>, vector<16x384xf32>, vector<16x384xf32>, vector<16x384xf32>, vector<16x384xf32>, vector<16x384xf32> -> vector<144x384xf32>
    %12 = arith.truncf %11 : vector<144x384xf32> to vector<144x384xbf16>
    %c0_4 = arith.constant 0 : index
    %c0_5 = arith.constant 0 : index
    %13 = vector.load %arg3[%c0_4, %c0_5] : memref<16x144xbf16, #tpu.memory_space<vmem>>, vector<16x144xbf16>
    %cst = arith.constant dense<0.000000e+00> : vector<16x384xf32>
    %14 = tpu.matmul %13, %12, %cst {dimension_numbers = #tpu.dot_dimension_numbers<[1], [0], [0], [1], [0, 0, 1, 1], [], []>} : vector<16x144xbf16>, vector<144x384xbf16>, vector<16x384xf32> -> vector<16x384xf32>
    %c0_6 = arith.constant 0 : index
    %c0_7 = arith.constant 0 : index
    %15 = vector.load %arg4[%c0_6, %c0_7] : memref<16x1xf32, #tpu.memory_space<vmem>>, vector<16x1xf32>
    %16 = vector.broadcast %15 : vector<16x1xf32> to vector<16x384xf32>
    %17 = arith.addf %14, %16 : vector<16x384xf32>
    %cst_8 = arith.constant 0.000000e+00 : f32
    %18 = vector.broadcast %cst_8 : f32 to vector<16x384xf32>
    %19 = arith.maximumf %17, %18 : vector<16x384xf32>
    %20 = vector.broadcast %2 : vector<1x384xf32> to vector<16x384xf32>
    %21 = arith.mulf %19, %20 : vector<16x384xf32>
    %c19_i32 = arith.constant 19 : i32
    %22 = tpu.dynamic_rotate %21 by %c19_i32 dim 1 : vector<16x384xf32>, i32 -> vector<16x384xf32>
    %c18_i32 = arith.constant 18 : i32
    %23 = tpu.dynamic_rotate %21 by %c18_i32 dim 1 : vector<16x384xf32>, i32 -> vector<16x384xf32>
    %c17_i32 = arith.constant 17 : i32
    %24 = tpu.dynamic_rotate %21 by %c17_i32 dim 1 : vector<16x384xf32>, i32 -> vector<16x384xf32>
    %c1_i32 = arith.constant 1 : i32
    %25 = tpu.dynamic_rotate %21 by %c1_i32 dim 1 : vector<16x384xf32>, i32 -> vector<16x384xf32>
    %c383_i32_9 = arith.constant 383 : i32
    %26 = tpu.dynamic_rotate %21 by %c383_i32_9 dim 1 : vector<16x384xf32>, i32 -> vector<16x384xf32>
    %c367_i32 = arith.constant 367 : i32
    %27 = tpu.dynamic_rotate %21 by %c367_i32 dim 1 : vector<16x384xf32>, i32 -> vector<16x384xf32>
    %c366_i32_10 = arith.constant 366 : i32
    %28 = tpu.dynamic_rotate %21 by %c366_i32_10 dim 1 : vector<16x384xf32>, i32 -> vector<16x384xf32>
    %c365_i32_11 = arith.constant 365 : i32
    %29 = tpu.dynamic_rotate %21 by %c365_i32_11 dim 1 : vector<16x384xf32>, i32 -> vector<16x384xf32>
    %30 = tpu.concatenate %22, %23, %24, %25, %21, %26, %27, %28, %29 in 0 : vector<16x384xf32>, vector<16x384xf32>, vector<16x384xf32>, vector<16x384xf32>, vector<16x384xf32>, vector<16x384xf32>, vector<16x384xf32>, vector<16x384xf32>, vector<16x384xf32> -> vector<144x384xf32>
    %31 = arith.truncf %30 : vector<144x384xf32> to vector<144x384xbf16>
    %c0_12 = arith.constant 0 : index
    %c0_13 = arith.constant 0 : index
    %32 = vector.load %arg5[%c0_12, %c0_13] : memref<16x144xbf16, #tpu.memory_space<vmem>>, vector<16x144xbf16>
    %cst_14 = arith.constant dense<0.000000e+00> : vector<16x384xf32>
    %33 = tpu.matmul %32, %31, %cst_14 {dimension_numbers = #tpu.dot_dimension_numbers<[1], [0], [0], [1], [0, 0, 1, 1], [], []>} : vector<16x144xbf16>, vector<144x384xbf16>, vector<16x384xf32> -> vector<16x384xf32>
    %c0_15 = arith.constant 0 : index
    %c0_16 = arith.constant 0 : index
    %34 = vector.load %arg6[%c0_15, %c0_16] : memref<16x1xf32, #tpu.memory_space<vmem>>, vector<16x1xf32>
    %35 = vector.broadcast %34 : vector<16x1xf32> to vector<16x384xf32>
    %36 = arith.addf %33, %35 : vector<16x384xf32>
    %37 = vector.broadcast %2 : vector<1x384xf32> to vector<16x384xf32>
    %38 = arith.mulf %36, %37 : vector<16x384xf32>
    %cst_17 = arith.constant dense<0.000000e+00> : vector<16xf32>
    %39 = vector.multi_reduction <add>, %38, %cst_17 [1] : vector<16x384xf32> to vector<16xf32>
    %40 = vector.shape_cast %39 : vector<16xf32> to vector<16x1xf32>
    %cst_18 = arith.constant 3.906250e-03 : f32
    %41 = vector.broadcast %cst_18 : f32 to vector<16x1xf32>
    %42 = arith.mulf %40, %41 : vector<16x1xf32>
    %c0_19 = arith.constant 0 : index
    %c0_20 = arith.constant 0 : index
    %43 = vector.load %arg7[%c0_19, %c0_20] : memref<16x4xf32, #tpu.memory_space<vmem>>, vector<16x4xf32>
    %44 = vector.broadcast %42 : vector<16x1xf32> to vector<16x4xf32>
    %45 = arith.mulf %43, %44 : vector<16x4xf32>
    %cst_21 = arith.constant dense<0.000000e+00> : vector<4xf32>
    %46 = vector.multi_reduction <add>, %45, %cst_21 [0] : vector<16x4xf32> to vector<4xf32>
    %47 = vector.shape_cast %46 : vector<4xf32> to vector<1x4xf32>
    %c0_22 = arith.constant 0 : index
    %c0_23 = arith.constant 0 : index
    %48 = vector.load %arg8[%c0_22, %c0_23] : memref<1x4xf32, #tpu.memory_space<vmem>>, vector<1x4xf32>
    %49 = arith.addf %47, %48 : vector<1x4xf32>
    %cst_24 = arith.constant 0.000000e+00 : f32
    %50 = vector.broadcast %cst_24 : f32 to vector<1x4xf32>
    %51 = arith.maximumf %49, %50 : vector<1x4xf32>
    %c0_25 = arith.constant 0 : index
    %c0_26 = arith.constant 0 : index
    %52 = vector.load %arg9[%c0_25, %c0_26] : memref<16x4xf32, #tpu.memory_space<vmem>>, vector<16x4xf32>
    %53 = vector.broadcast %51 : vector<1x4xf32> to vector<16x4xf32>
    %54 = arith.mulf %52, %53 : vector<16x4xf32>
    %cst_27 = arith.constant dense<0.000000e+00> : vector<16xf32>
    %55 = vector.multi_reduction <add>, %54, %cst_27 [1] : vector<16x4xf32> to vector<16xf32>
    %56 = vector.shape_cast %55 : vector<16xf32> to vector<16x1xf32>
    %c0_28 = arith.constant 0 : index
    %c0_29 = arith.constant 0 : index
    %57 = vector.load %arg10[%c0_28, %c0_29] : memref<16x1xf32, #tpu.memory_space<vmem>>, vector<16x1xf32>
    %58 = arith.addf %56, %57 : vector<16x1xf32>
    %59 = arith.negf %58 : vector<16x1xf32>
    %60 = math.exp %59 : vector<16x1xf32>
    %cst_30 = arith.constant 1.000000e+00 : f32
    %61 = vector.broadcast %cst_30 : f32 to vector<16x1xf32>
    %62 = arith.addf %61, %60 : vector<16x1xf32>
    %63 = arith.divf %61, %62 : vector<16x1xf32>
    %c365_i32_31 = arith.constant 365 : i32
    %64 = tpu.dynamic_rotate %1 by %c365_i32_31 dim 1 : vector<16x384xf32>, i32 -> vector<16x384xf32>
    %65 = vector.broadcast %63 : vector<16x1xf32> to vector<16x384xf32>
    %66 = arith.mulf %36, %65 : vector<16x384xf32>
    %67 = arith.addf %66, %64 : vector<16x384xf32>
    %c0_32 = arith.constant 0 : index
    %c0_33 = arith.constant 0 : index
    %c0_34 = arith.constant 0 : index
    %68 = vector.load %arg11[%c0_32, %c0_33, %c0_34] : memref<1x16x384xf32, #tpu.memory_space<vmem>>, vector<1x16x384xf32>
    %69 = vector.shape_cast %68 : vector<1x16x384xf32> to vector<16x384xf32>
    %70 = vector.shape_cast %67 : vector<16x384xf32> to vector<1x16x384xf32>
    tpu.vector_store %arg11[%c0_32, %c0_33, %c0_34], %70 {strides = array<i32>} : memref<1x16x384xf32, #tpu.memory_space<vmem>>, vector<1x16x384xf32>,
    return
  }
  func.func @transform_0(%arg0: i32) -> (i32, i32, i32) {
    %c0_i32 = arith.constant 0 : i32
    %c0_i32_0 = arith.constant 0 : i32
    %c0_i32_1 = arith.constant 0 : i32
    return %arg0, %c0_i32, %c0_i32_0 : i32, i32, i32
  }
  func.func @transform_1(%arg0: i32) -> (i32, i32) {
    %c0_i32 = arith.constant 0 : i32
    %c0_i32_0 = arith.constant 0 : i32
    %c0_i32_1 = arith.constant 0 : i32
    return %c0_i32, %c0_i32_0 : i32, i32
  }
  func.func @transform_2(%arg0: i32) -> (i32, i32) {
    %c0_i32 = arith.constant 0 : i32
    %c0_i32_0 = arith.constant 0 : i32
    %c0_i32_1 = arith.constant 0 : i32
    return %c0_i32, %c0_i32_0 : i32, i32
  }
  func.func @transform_3(%arg0: i32) -> (i32, i32) {
    %c0_i32 = arith.constant 0 : i32
    %c0_i32_0 = arith.constant 0 : i32
    %c0_i32_1 = arith.constant 0 : i32
    return %c0_i32, %c0_i32_0 : i32, i32
  }
  func.func @transform_4(%arg0: i32) -> (i32, i32) {
    %c0_i32 = arith.constant 0 : i32
    %c0_i32_0 = arith.constant 0 : i32
    %c0_i32_1 = arith.constant 0 : i32
    return %c0_i32, %c0_i32_0 : i32, i32
  }
  func.func @transform_5(%arg0: i32) -> (i32, i32) {
    %c0_i32 = arith.constant 0 : i32
    %c0_i32_0 = arith.constant 0 : i32
    %c0_i32_1 = arith.constant 0 : i32
    return %c0_i32, %c0_i32_0 : i32, i32
  }
  func.func @transform_6(%arg0: i32) -> (i32, i32) {
    %c0_i32 = arith.constant 0 : i32
    %c0_i32_0 = arith.constant 0 : i32
    %c0_i32_1 = arith.constant 0 : i32
    return %c0_i32, %c0_i32_0 : i32, i32
  }
  func.func @transform_7(%arg0: i32) -> (i32, i32) {
    %c0_i32 = arith.constant 0 : i32
    %c0_i32_0 = arith.constant 0 : i32
    %c0_i32_1 = arith.constant 0 : i32
    return %c0_i32, %c0_i32_0 : i32, i32
  }
  func.func @transform_8(%arg0: i32) -> (i32, i32) {
    %c0_i32 = arith.constant 0 : i32
    %c0_i32_0 = arith.constant 0 : i32
    %c0_i32_1 = arith.constant 0 : i32
    return %c0_i32, %c0_i32_0 : i32, i32
  }
  func.func @transform_9(%arg0: i32) -> (i32, i32) {
    %c0_i32 = arith.constant 0 : i32
    %c0_i32_0 = arith.constant 0 : i32
    %c0_i32_1 = arith.constant 0 : i32
    return %c0_i32, %c0_i32_0 : i32, i32
  }
  func.func @transform_10(%arg0: i32) -> (i32, i32, i32) {
    %c0_i32 = arith.constant 0 : i32
    %c0_i32_0 = arith.constant 0 : i32
    %c0_i32_1 = arith.constant 0 : i32
    return %arg0, %c0_i32, %c0_i32_0 : i32, i32, i32
  }
}

</mosaic_0001>

<llo_original>
// kernel: tpu_custom_call.1
$region0: #{tpu_custom_call.1}
  #allocation0 [shape = 'u32[]', space=smem, size = 0x4, offset = 0x4, fixed_abs, tag = 'smem constant byte address 0x4 - core index']
  #allocation1 [shape = 'u32[144,128]{1,0:T(1,128)}', space=vmem, size = 0x12000, scoped, tag = 'internal scratch']
  %s0 = inlined_call_operand.hbm [shape: f32[2,16,384], index: 0, kind: input, shape index: {}]
  %s1 = inlined_call_operand.vmem [shape: f32[1,384], index: 1, kind: input, shape index: {}]
  %s2 = inlined_call_operand.vmem [shape: bf16[16,144], index: 2, kind: input, shape index: {}]
  %s3 = inlined_call_operand.vmem [shape: f32[16,1], index: 3, kind: input, shape index: {}]
  %s4 = inlined_call_operand.vmem [shape: bf16[16,144], index: 4, kind: input, shape index: {}]
  %s5 = inlined_call_operand.vmem [shape: f32[16,1], index: 5, kind: input, shape index: {}]
  %s6 = inlined_call_operand.vmem [shape: f32[16,4], index: 6, kind: input, shape index: {}]
  %s7 = inlined_call_operand.vmem [shape: f32[1,4], index: 7, kind: input, shape index: {}]
  %s8 = inlined_call_operand.vmem [shape: f32[16,4], index: 8, kind: input, shape index: {}]
  %s9 = inlined_call_operand.vmem [shape: f32[16,1], index: 9, kind: input, shape index: {}]
  %s10 = inlined_call_operand.hbm [shape: f32[2,16,384], index: 10, kind: output, shape index: {}]
  %s11 = sld [smem:[#allocation0]]
  $region77: #{tpu_custom_call.1} parent=0
    _
  %s13 = ssub.s32 1, %s11
  %s14 = scalar_select 0, %s13, %s11
  $region1: #{tpu_custom_call.1} parent=0
    #allocation2 [shape = 'u8[49152]{0}', space=vmem, size = 0xc000, scoped, tag = 'input window, operand 0']
    #allocation3 [shape = 's32[2]{0}', space=sflag, size = 0x8, scoped, tag = 'scoped memory for tpu_custom_call.1']
    #allocation4 [shape = 's32[2]{0}', space=sflag, size = 0x8, scoped, tag = 'scoped memory for tpu_custom_call.1']
    #allocation5 [shape = 'u8[49152]{0}', space=vmem, size = 0xc000, scoped, tag = 'output window, operand 0']
    %15 = vsyncpa [#allocation3], 0
    %s16 = scalar_lea.sflag [#allocation3], 1
    %17 = vsyncpa %s16, 0
    %18 = vsyncpa [#allocation4], 0
    %s19 = scalar_lea.sflag [#allocation4], 1
    %20 = vsyncpa %s19, 0
    loop: start=0, step=1, limit=4
    $region2: #{tpu_custom_call.1} parent=1 // loop_pre_header
      _
    $region3: #{tpu_custom_call.1} parent=1 // loop_header
      %s22 = sphi 0, %s26
      %p23 = scmp.ge.s32.totalorder %s22, 4
      %s32 = sphi 0, %s34
      %s35 = sphi 0, %s32
      %s36 = sphi 0, %s35
      %s52 = sphi 0, %s36
      %s56 = sphi 0, %s56
      %s58 = sphi 0, %s56
      %s59 = sphi 0, %s58
      %s73 = sphi 0, %s59
      %s77 = sphi 0, %s77
      %s79 = sphi 0, %s77
      %s80 = sphi 0, %s79
      %s94 = sphi 0, %s80
      %s98 = sphi 0, %s98
      %s100 = sphi 0, %s98
      %s101 = sphi 0, %s100
      %s115 = sphi 0, %s101
      %s119 = sphi 0, %s119
      %s121 = sphi 0, %s119
      %s122 = sphi 0, %s121
      %s136 = sphi 0, %s122
      %s140 = sphi 0, %s140
      %s142 = sphi 0, %s140
      %s143 = sphi 0, %s142
      %s157 = sphi 0, %s143
      %s161 = sphi 0, %s161
      %s163 = sphi 0, %s161
      %s164 = sphi 0, %s163
      %s178 = sphi 0, %s164
      %s182 = sphi 0, %s182
      %s184 = sphi 0, %s182
      %s185 = sphi 0, %s184
      %s199 = sphi 0, %s185
      %s203 = sphi 0, %s203
      %s205 = sphi 0, %s203
      %s206 = sphi 0, %s205
      %s220 = sphi 0, %s206
      %s224 = sphi 0, %s224
      %s226 = sphi 0, %s224
      %s227 = sphi 0, %s226
      %s241 = sphi 0, %s227
      %s247 = sphi 0, %s249
      %s250 = sphi 0, %s247
      %s251 = sphi 0, %s250
      %s267 = sphi 0, %s251
    $region4: #{tpu_custom_call.1} parent=1 // loop_header_branch
      %25 = sbr.rel (%p23) target = $region8
    $region5: #{tpu_custom_call.1} parent=1 // loop_body
      %s27 = ssub.s32 %s22, 1
      %s28 = ssub.s32 %s22, 2
      %s29 = sadd.s32 %s22, 1
      %s30 = ssub.s32 %s22, %s29
      %p31 = scmp.eq.s32.totalorder %s30, 0
      %s33 = sadd.s32 %s32, 1
      %s34 = scalar_select %p31, %s32, %s33
      %p37 = pneg %p31
      %p38 = scmp.eq.s32.totalorder %s22, 1
      %p39 = por %p37, %p38
      %p40 = scmp.ne.s32.totalorder %s32, %s35
      %p41 = scmp.eq.s32.totalorder %s22, 0
      %p42 = por %p40, %p41
      %p43 = scmp.ne.s32.totalorder %s32, %s35
      %p44 = scmp.eq.s32.totalorder %s27, 1
      %p45 = por %p43, %p44
      %p46 = scmp.ne.s32.totalorder %s35, %s36
      %p47 = scmp.eq.s32.totalorder %s27, 0
      %p48 = por %p46, %p47
      %p49 = scmp.ne.s32.totalorder %s35, %s36
      %p50 = scmp.eq.s32.totalorder %s28, 1
      %p51 = por %p49, %p50
      %p53 = scmp.ne.s32.totalorder %s36, %s52
      %p54 = scmp.eq.s32.totalorder %s28, 0
      %p55 = por %p53, %p54
      %s57 = sadd.s32 %s56, 1
      %p60 = scmp.eq.s32.totalorder %s22, 1
      %p61 = scmp.ne.s32.totalorder %s56, %s58
      %p62 = scmp.eq.s32.totalorder %s22, 0
      %p63 = por %p61, %p62
      %p64 = scmp.ne.s32.totalorder %s56, %s58
      %p65 = scmp.eq.s32.totalorder %s27, 1
      %p66 = por %p64, %p65
      %p67 = scmp.ne.s32.totalorder %s58, %s59
      %p68 = scmp.eq.s32.totalorder %s27, 0
      %p69 = por %p67, %p68
      %p70 = scmp.ne.s32.totalorder %s58, %s59
      %p71 = scmp.eq.s32.totalorder %s28, 1
      %p72 = por %p70, %p71
      %p74 = scmp.ne.s32.totalorder %s59, %s73
      %p75 = scmp.eq.s32.totalorder %s28, 0
      %p76 = por %p74, %p75
      %s78 = sadd.s32 %s77, 1
      %p81 = scmp.eq.s32.totalorder %s22, 1
      %p82 = scmp.ne.s32.totalorder %s77, %s79
      %p83 = scmp.eq.s32.totalorder %s22, 0
      %p84 = por %p82, %p83
      %p85 = scmp.ne.s32.totalorder %s77, %s79
      %p86 = scmp.eq.s32.totalorder %s27, 1
      %p87 = por %p85, %p86
      %p88 = scmp.ne.s32.totalorder %s79, %s80
      %p89 = scmp.eq.s32.totalorder %s27, 0
      %p90 = por %p88, %p89
      %p91 = scmp.ne.s32.totalorder %s79, %s80
      %p92 = scmp.eq.s32.totalorder %s28, 1
      %p93 = por %p91, %p92
      %p95 = scmp.ne.s32.totalorder %s80, %s94
      %p96 = scmp.eq.s32.totalorder %s28, 0
      %p97 = por %p95, %p96
      %s99 = sadd.s32 %s98, 1
      %p102 = scmp.eq.s32.totalorder %s22, 1
      %p103 = scmp.ne.s32.totalorder %s98, %s100
      %p104 = scmp.eq.s32.totalorder %s22, 0
      %p105 = por %p103, %p104
      %p106 = scmp.ne.s32.totalorder %s98, %s100
      %p107 = scmp.eq.s32.totalorder %s27, 1
      %p108 = por %p106, %p107
      %p109 = scmp.ne.s32.totalorder %s100, %s101
      %p110 = scmp.eq.s32.totalorder %s27, 0
      %p111 = por %p109, %p110
      %p112 = scmp.ne.s32.totalorder %s100, %s101
      %p113 = scmp.eq.s32.totalorder %s28, 1
      %p114 = por %p112, %p113
      %p116 = scmp.ne.s32.totalorder %s101, %s115
      %p117 = scmp.eq.s32.totalorder %s28, 0
      %p118 = por %p116, %p117
      %s120 = sadd.s32 %s119, 1
      %p123 = scmp.eq.s32.totalorder %s22, 1
      %p124 = scmp.ne.s32.totalorder %s119, %s121
      %p125 = scmp.eq.s32.totalorder %s22, 0
      %p126 = por %p124, %p125
      %p127 = scmp.ne.s32.totalorder %s119, %s121
      %p128 = scmp.eq.s32.totalorder %s27, 1
      %p129 = por %p127, %p128
      %p130 = scmp.ne.s32.totalorder %s121, %s122
      %p131 = scmp.eq.s32.totalorder %s27, 0
      %p132 = por %p130, %p131
      %p133 = scmp.ne.s32.totalorder %s121, %s122
      %p134 = scmp.eq.s32.totalorder %s28, 1
      %p135 = por %p133, %p134
      %p137 = scmp.ne.s32.totalorder %s122, %s136
      %p138 = scmp.eq.s32.totalorder %s28, 0
      %p139 = por %p137, %p138
      %s141 = sadd.s32 %s140, 1
      %p144 = scmp.eq.s32.totalorder %s22, 1
      %p145 = scmp.ne.s32.totalorder %s140, %s142
      %p146 = scmp.eq.s32.totalorder %s22, 0
      %p147 = por %p145, %p146
      %p148 = scmp.ne.s32.totalorder %s140, %s142
      %p149 = scmp.eq.s32.totalorder %s27, 1
      %p150 = por %p148, %p149
      %p151 = scmp.ne.s32.totalorder %s142, %s143
      %p152 = scmp.eq.s32.totalorder %s27, 0
      %p153 = por %p151, %p152
      %p154 = scmp.ne.s32.totalorder %s142, %s143
      %p155 = scmp.eq.s32.totalorder %s28, 1
      %p156 = por %p154, %p155
      %p158 = scmp.ne.s32.totalorder %s143, %s157
      %p159 = scmp.eq.s32.totalorder %s28, 0
      %p160 = por %p158, %p159
      %s162 = sadd.s32 %s161, 1
      %p165 = scmp.eq.s32.totalorder %s22, 1
      %p166 = scmp.ne.s32.totalorder %s161, %s163
      %p167 = scmp.eq.s32.totalorder %s22, 0
      %p168 = por %p166, %p167
      %p169 = scmp.ne.s32.totalorder %s161, %s163
      %p170 = scmp.eq.s32.totalorder %s27, 1
      %p171 = por %p169, %p170
      %p172 = scmp.ne.s32.totalorder %s163, %s164
      %p173 = scmp.eq.s32.totalorder %s27, 0
      %p174 = por %p172, %p173
      %p175 = scmp.ne.s32.totalorder %s163, %s164
      %p176 = scmp.eq.s32.totalorder %s28, 1
      %p177 = por %p175, %p176
      %p179 = scmp.ne.s32.totalorder %s164, %s178
      %p180 = scmp.eq.s32.totalorder %s28, 0
      %p181 = por %p179, %p180
      %s183 = sadd.s32 %s182, 1
      %p186 = scmp.eq.s32.totalorder %s22, 1
      %p187 = scmp.ne.s32.totalorder %s182, %s184
      %p188 = scmp.eq.s32.totalorder %s22, 0
      %p189 = por %p187, %p188
      %p190 = scmp.ne.s32.totalorder %s182, %s184
      %p191 = scmp.eq.s32.totalorder %s27, 1
      %p192 = por %p190, %p191
      %p193 = scmp.ne.s32.totalorder %s184, %s185
      %p194 = scmp.eq.s32.totalorder %s27, 0
      %p195 = por %p193, %p194
      %p196 = scmp.ne.s32.totalorder %s184, %s185
      %p197 = scmp.eq.s32.totalorder %s28, 1
      %p198 = por %p196, %p197
      %p200 = scmp.ne.s32.totalorder %s185, %s199
      %p201 = scmp.eq.s32.totalorder %s28, 0
      %p202 = por %p200, %p201
      %s204 = sadd.s32 %s203, 1
      %p207 = scmp.eq.s32.totalorder %s22, 1
      %p208 = scmp.ne.s32.totalorder %s203, %s205
      %p209 = scmp.eq.s32.totalorder %s22, 0
      %p210 = por %p208, %p209
      %p211 = scmp.ne.s32.totalorder %s203, %s205
      %p212 = scmp.eq.s32.totalorder %s27, 1
      %p213 = por %p211, %p212
      %p214 = scmp.ne.s32.totalorder %s205, %s206
      %p215 = scmp.eq.s32.totalorder %s27, 0
      %p216 = por %p214, %p215
      %p217 = scmp.ne.s32.totalorder %s205, %s206
      %p218 = scmp.eq.s32.totalorder %s28, 1
      %p219 = por %p217, %p218
      %p221 = scmp.ne.s32.totalorder %s206, %s220
      %p222 = scmp.eq.s32.totalorder %s28, 0
      %p223 = por %p221, %p222
      %s225 = sadd.s32 %s224, 1
      %p228 = scmp.eq.s32.totalorder %s22, 1
      %p229 = scmp.ne.s32.totalorder %s224, %s226
      %p230 = scmp.eq.s32.totalorder %s22, 0
      %p231 = por %p229, %p230
      %p232 = scmp.ne.s32.totalorder %s224, %s226
      %p233 = scmp.eq.s32.totalorder %s27, 1
      %p234 = por %p232, %p233
      %p235 = scmp.ne.s32.totalorder %s226, %s227
      %p236 = scmp.eq.s32.totalorder %s27, 0
      %p237 = por %p235, %p236
      %p238 = scmp.ne.s32.totalorder %s226, %s227
      %p239 = scmp.eq.s32.totalorder %s28, 1
      %p240 = por %p238, %p239
      %p242 = scmp.ne.s32.totalorder %s227, %s241
      %p243 = scmp.eq.s32.totalorder %s28, 0
      %p244 = por %p242, %p243
      %s245 = ssub.s32 %s22, %s29
      %p246 = scmp.eq.s32.totalorder %s245, 0
      %s248 = sadd.s32 %s247, 1
      %s249 = scalar_select %p246, %s247, %s248
      %p252 = pneg %p246
      %p253 = scmp.eq.s32.totalorder %s22, 1
      %p254 = por %p252, %p253
      %p255 = scmp.ne.s32.totalorder %s247, %s250
      %p256 = scmp.eq.s32.totalorder %s22, 0
      %p257 = por %p255, %p256
      %p258 = scmp.ne.s32.totalorder %s247, %s250
      %p259 = scmp.eq.s32.totalorder %s27, 1
      %p260 = por %p258, %p259
      %p261 = scmp.ne.s32.totalorder %s250, %s251
      %p262 = scmp.eq.s32.totalorder %s27, 0
      %p263 = por %p261, %p262
      %p264 = scmp.ne.s32.totalorder %s250, %s251
      %p265 = scmp.eq.s32.totalorder %s28, 1
      %p266 = por %p264, %p265
      %p268 = scmp.ne.s32.totalorder %s251, %s267
      %p269 = scmp.eq.s32.totalorder %s28, 0
      %p270 = por %p268, %p269
      %p271 = scmp.le.s32.totalorder 1, %s22
      %p272 = scmp.lt.s32.totalorder %s22, 3
      %p273 = pnand %p271, %p272
      %p274 = pneg %p273
      // Predicated region
      $region9: #{tpu_custom_call.1} parent=5 // pred_check
        _
      $region10: #{tpu_custom_call.1} parent=5 // pred_check_branch
        %276 = sbr.rel (%p273) target = $region12
      $region11: #{tpu_custom_call.1} parent=5 // pred_region
        %s277 = ssub.s32 %s22, 1
        // Predicated region
        $region13: #{tpu_custom_call.1} parent=11 // pred_check
          %p278 = pneg %p69
        $region14: #{tpu_custom_call.1} parent=11 // pred_check_branch
          %280 = sbr.rel (%p278) target = $region16
        $region15: #{tpu_custom_call.1} parent=11 // pred_region
          _
        $region16: #{tpu_custom_call.1} parent=11 // pred_fallthru
          _
        // Predicated region
        $region17: #{tpu_custom_call.1} parent=11 // pred_check
          %p281 = pneg %p90
        $region18: #{tpu_custom_call.1} parent=11 // pred_check_branch
          %283 = sbr.rel (%p281) target = $region20
        $region19: #{tpu_custom_call.1} parent=11 // pred_region
          _
        $region20: #{tpu_custom_call.1} parent=11 // pred_fallthru
          _
        // Predicated region
        $region21: #{tpu_custom_call.1} parent=11 // pred_check
          %p284 = pneg %p111
        $region22: #{tpu_custom_call.1} parent=11 // pred_check_branch
          %286 = sbr.rel (%p284) target = $region24
        $region23: #{tpu_custom_call.1} parent=11 // pred_region
          _
        $region24: #{tpu_custom_call.1} parent=11 // pred_fallthru
          _
        // Predicated region
        $region25: #{tpu_custom_call.1} parent=11 // pred_check
          %p287 = pneg %p132
        $region26: #{tpu_custom_call.1} parent=11 // pred_check_branch
          %289 = sbr.rel (%p287) target = $region28
        $region27: #{tpu_custom_call.1} parent=11 // pred_region
          _
        $region28: #{tpu_custom_call.1} parent=11 // pred_fallthru
          _
        // Predicated region
        $region29: #{tpu_custom_call.1} parent=11 // pred_check
          %p290 = pneg %p153
        $region30: #{tpu_custom_call.1} parent=11 // pred_check_branch
          %292 = sbr.rel (%p290) target = $region32
        $region31: #{tpu_custom_call.1} parent=11 // pred_region
          _
        $region32: #{tpu_custom_call.1} parent=11 // pred_fallthru
          _
        // Predicated region
        $region33: #{tpu_custom_call.1} parent=11 // pred_check
          %p293 = pneg %p174
        $region34: #{tpu_custom_call.1} parent=11 // pred_check_branch
          %295 = sbr.rel (%p293) target = $region36
        $region35: #{tpu_custom_call.1} parent=11 // pred_region
          _
        $region36: #{tpu_custom_call.1} parent=11 // pred_fallthru
          _
        // Predicated region
        $region37: #{tpu_custom_call.1} parent=11 // pred_check
          %p296 = pneg %p195
        $region38: #{tpu_custom_call.1} parent=11 // pred_check_branch
          %298 = sbr.rel (%p296) target = $region40
        $region39: #{tpu_custom_call.1} parent=11 // pred_region
          _
        $region40: #{tpu_custom_call.1} parent=11 // pred_fallthru
          _
        // Predicated region
        $region41: #{tpu_custom_call.1} parent=11 // pred_check
          %p299 = pneg %p216
        $region42: #{tpu_custom_call.1} parent=11 // pred_check_branch
          %301 = sbr.rel (%p299) target = $region44
        $region43: #{tpu_custom_call.1} parent=11 // pred_region
          _
        $region44: #{tpu_custom_call.1} parent=11 // pred_fallthru
          _
        // Predicated region
        $region45: #{tpu_custom_call.1} parent=11 // pred_check
          %p302 = pneg %p237
        $region46: #{tpu_custom_call.1} parent=11 // pred_check_branch
          %304 = sbr.rel (%p302) target = $region48
        $region47: #{tpu_custom_call.1} parent=11 // pred_region
          _
        $region48: #{tpu_custom_call.1} parent=11 // pred_fallthru
          _
      $region12: #{tpu_custom_call.1} parent=5 // pred_fallthru
        _
      %p305 = scmp.lt.s32.totalorder %s22, 2
      // Predicated region
      $region49: #{tpu_custom_call.1} parent=5 // pred_check
        %p306 = pneg %p305
      $region50: #{tpu_custom_call.1} parent=5 // pred_check_branch
        %308 = sbr.rel (%p306) target = $region52
      $region51: #{tpu_custom_call.1} parent=5 // pred_region
        // Predicated region
        $region53: #{tpu_custom_call.1} parent=51 // pred_check
          %p309 = pneg %p42
        $region54: #{tpu_custom_call.1} parent=51 // pred_check_branch
          %311 = sbr.rel (%p309) target = $region56
        $region55: #{tpu_custom_call.1} parent=51 // pred_region
          %s312 = sand.u32 %s32, 1
          %s313 = scalar_lea.sflag [#allocation3], %s312
          %s314 = sand.u32 %s32, 1
          %s315 = smul.addr %s314, 48
          %s316 = scalar_lea.vmem [#allocation2], %s315
          %s318 = ssub.s32 768, 768
          %319 = vsyncadd %s313, %s318
          %s320 = smul.addr %s22, 6
          %s321 = smul.addr %s320, 128
          %s322 = scalar_lea.hbm %s0, %s321
          %s323 = sshll.u32 %s316, 4
          %s324 = int_to_ptr.vmem [resolvable:$true] %s323
          %329 = dma.hbm_to_vmem [thread:$0]  %s322, 768, %s324, %s313, 384, 384, 24
        $region56: #{tpu_custom_call.1} parent=51 // pred_fallthru
          _
      $region52: #{tpu_custom_call.1} parent=5 // pred_fallthru
        _
      %p330 = scmp.le.s32.totalorder 1, %s22
      %p331 = scmp.lt.s32.totalorder %s22, 3
      %p332 = pnand %p330, %p331
      %p333 = pneg %p332
      // Predicated region
      $region57: #{tpu_custom_call.1} parent=5 // pred_check
        _
      $region58: #{tpu_custom_call.1} parent=5 // pred_check_branch
        %335 = sbr.rel (%p332) target = $region60
      $region59: #{tpu_custom_call.1} parent=5 // pred_region
        %s336 = ssub.s32 %s22, 1
        %s337 = sand.u32 %s35, 1
        %s338 = scalar_lea.sflag [#allocation3], %s337
        %s339 = sand.u32 %s35, 1
        %s340 = smul.addr %s339, 48
        %s341 = scalar_lea.vmem [#allocation2], %s340
        // Predicated region
        $region61: #{tpu_custom_call.1} parent=59 // pred_check
          %p342 = pneg %p48
        $region62: #{tpu_custom_call.1} parent=59 // pred_check_branch
          %344 = sbr.rel (%p342) target = $region64
        $region63: #{tpu_custom_call.1} parent=59 // pred_region
          %345 = dma.done %s338, 768
        $region64: #{tpu_custom_call.1} parent=59 // pred_fallthru
          _
        %s346 = sand.u32 %s35, 1
        %s347 = scalar_lea.sflag [#allocation3], %s346
        %s348 = sand.u32 %s35, 1
        %s349 = smul.addr %s348, 48
        %s350 = scalar_lea.vmem [#allocation2], %s349
        %p351 = pneg %p48
        %p352 = pneg %p45
        %p353 = pneg %p69
        %p354 = pneg %p66
        %p355 = pneg %p90
        %p356 = pneg %p87
        %p357 = pneg %p111
        %p358 = pneg %p108
        %p359 = pneg %p132
        %p360 = pneg %p129
        %p361 = pneg %p153
        %p362 = pneg %p150
        %p363 = pneg %p174
        %p364 = pneg %p171
        %p365 = pneg %p195
        %p366 = pneg %p192
        %p367 = pneg %p216
        %p368 = pneg %p213
        %p369 = pneg %p237
        %p370 = pneg %p234
        %p371 = pneg %p263
        %p372 = pneg %p260
        %s373 = sand.u32 %s250, 1
        %s374 = scalar_lea.sflag [#allocation4], %s373
        %s375 = sand.u32 %s250, 1
        %s376 = smul.addr %s375, 48
        %s377 = scalar_lea.vmem [#allocation5], %s376
        %v379 = vld [vmem:[%s341] sm:$0xff]
        %v380 = vld [vmem:[%s341 + $0x8] sm:$0xff]
        %v381 = vld [vmem:[%s341 + $0x10] sm:$0xff]
        %v382 = vld [vmem:[%s341 + $0x18] sm:$0xff]
        %v383 = vld [vmem:[%s341 + $0x20] sm:$0xff]
        %v384 = vld [vmem:[%s341 + $0x28] sm:$0xff]
        %v385 = vld [vmem:[%s1] sm:$0x7]
        %386 = vrot.lane.b32.xlu0 %v379, 127
        %v387 = vpop.permute.xlu0 %386
        %388 = vrot.lane.b32.xlu0 %v382, 127
        %v389 = vpop.permute.xlu0 %388
        %390 = vrot.lane.b32.xlu0 %v380, 127
        %v391 = vpop.permute.xlu0 %390
        %392 = vrot.lane.b32.xlu0 %v383, 127
        %v393 = vpop.permute.xlu0 %392
        %394 = vrot.lane.b32.xlu0 %v381, 127
        %v395 = vpop.permute.xlu0 %394
        %396 = vrot.lane.b32.xlu0 %v384, 127
        %v397 = vpop.permute.xlu0 %396
        %v398 = vlaneseq
        %v399 = vand.u32 %v398, 127
        %vm400 = vcmp.lt.s32.totalorder %v399, 127
        %v401 = vsel %vm400, %v391, %v395
        %v402 = vsel %vm400, %v393, %v397
        %v403 = vsel %vm400, %v387, %v391
        %v404 = vsel %vm400, %v389, %v393
        %v405 = vsel %vm400, %v395, %v387
        %v406 = vsel %vm400, %v397, %v389
        %407 = vrot.lane.b32.xlu0 %v379, 126
        %v408 = vpop.permute.xlu0 %407
        %409 = vrot.lane.b32.xlu0 %v382, 126
        %v410 = vpop.permute.xlu0 %409
        %411 = vrot.lane.b32.xlu0 %v380, 126
        %v412 = vpop.permute.xlu0 %411
        %413 = vrot.lane.b32.xlu0 %v383, 126
        %v414 = vpop.permute.xlu0 %413
        %415 = vrot.lane.b32.xlu0 %v381, 126
        %v416 = vpop.permute.xlu0 %415
        %417 = vrot.lane.b32.xlu0 %v384, 126
        %v418 = vpop.permute.xlu0 %417
        %vm419 = vcmp.lt.s32.totalorder %v399, 126
        %v420 = vsel %vm419, %v412, %v416
        %v421 = vsel %vm419, %v414, %v418
        %v422 = vsel %vm419, %v408, %v412
        %v423 = vsel %vm419, %v410, %v414
        %v424 = vsel %vm419, %v416, %v408
        %v425 = vsel %vm419, %v418, %v410
        %426 = vrot.lane.b32.xlu0 %v379, 110
        %v427 = vpop.permute.xlu0 %426
        %428 = vrot.lane.b32.xlu0 %v382, 110
        %v429 = vpop.permute.xlu0 %428
        %430 = vrot.lane.b32.xlu0 %v380, 110
        %v431 = vpop.permute.xlu0 %430
        %432 = vrot.lane.b32.xlu0 %v383, 110
        %v433 = vpop.permute.xlu0 %432
        %434 = vrot.lane.b32.xlu0 %v381, 110
        %v435 = vpop.permute.xlu0 %434
        %436 = vrot.lane.b32.xlu0 %v384, 110
        %v437 = vpop.permute.xlu0 %436
        %vm438 = vcmp.lt.s32.totalorder %v399, 110
        %v439 = vsel %vm438, %v431, %v435
        %v440 = vsel %vm438, %v433, %v437
        %v441 = vsel %vm438, %v427, %v431
        %v442 = vsel %vm438, %v429, %v433
        %v443 = vsel %vm438, %v435, %v427
        %v444 = vsel %vm438, %v437, %v429
        %445 = vrot.lane.b32.xlu0 %v379, 109
        %v446 = vpop.permute.xlu0 %445
        %447 = vrot.lane.b32.xlu0 %v382, 109
        %v448 = vpop.permute.xlu0 %447
        %449 = vrot.lane.b32.xlu0 %v380, 109
        %v450 = vpop.permute.xlu0 %449
        %451 = vrot.lane.b32.xlu0 %v383, 109
        %v452 = vpop.permute.xlu0 %451
        %453 = vrot.lane.b32.xlu0 %v381, 109
        %v454 = vpop.permute.xlu0 %453
        %455 = vrot.lane.b32.xlu0 %v384, 109
        %v456 = vpop.permute.xlu0 %455
        %vm457 = vcmp.lt.s32.totalorder %v399, 109
        %v458 = vsel %vm457, %v450, %v454
        %v459 = vsel %vm457, %v452, %v456
        %v460 = vsel %vm457, %v446, %v450
        %v461 = vsel %vm457, %v448, %v452
        %v462 = vsel %vm457, %v454, %v446
        %v463 = vsel %vm457, %v456, %v448
        %464 = vrot.lane.b32.xlu0 %v379, 108
        %v465 = vpop.permute.xlu0 %464
        %466 = vrot.lane.b32.xlu0 %v382, 108
        %v467 = vpop.permute.xlu0 %466
        %468 = vrot.lane.b32.xlu0 %v380, 108
        %v469 = vpop.permute.xlu0 %468
        %470 = vrot.lane.b32.xlu0 %v383, 108
        %v471 = vpop.permute.xlu0 %470
        %472 = vrot.lane.b32.xlu0 %v381, 108
        %v473 = vpop.permute.xlu0 %472
        %474 = vrot.lane.b32.xlu0 %v384, 108
        %v475 = vpop.permute.xlu0 %474
        %vm476 = vcmp.lt.s32.totalorder %v399, 108
        %v477 = vsel %vm476, %v469, %v473
        %v478 = vsel %vm476, %v471, %v475
        %v479 = vsel %vm476, %v465, %v469
        %v480 = vsel %vm476, %v467, %v471
        %v481 = vsel %vm476, %v473, %v465
        %v482 = vsel %vm476, %v475, %v467
        %483 = vrot.lane.b32.xlu0 %v379, 92
        %v484 = vpop.permute.xlu0 %483
        %485 = vrot.lane.b32.xlu0 %v382, 92
        %v486 = vpop.permute.xlu0 %485
        %487 = vrot.lane.b32.xlu0 %v380, 92
        %v488 = vpop.permute.xlu0 %487
        %489 = vrot.lane.b32.xlu0 %v383, 92
        %v490 = vpop.permute.xlu0 %489
        %491 = vrot.lane.b32.xlu0 %v381, 92
        %v492 = vpop.permute.xlu0 %491
        %493 = vrot.lane.b32.xlu0 %v384, 92
        %v494 = vpop.permute.xlu0 %493
        %vm495 = vcmp.lt.s32.totalorder %v399, 92
        %v496 = vsel %vm495, %v488, %v492
        %v497 = vsel %vm495, %v490, %v494
        %v498 = vsel %vm495, %v484, %v488
        %v499 = vsel %vm495, %v486, %v490
        %v500 = vsel %vm495, %v492, %v484
        %v501 = vsel %vm495, %v494, %v486
        %502 = vrot.lane.b32.xlu0 %v379, 91
        %v503 = vpop.permute.xlu0 %502
        %504 = vrot.lane.b32.xlu0 %v382, 91
        %v505 = vpop.permute.xlu0 %504
        %506 = vrot.lane.b32.xlu0 %v380, 91
        %v507 = vpop.permute.xlu0 %506
        %508 = vrot.lane.b32.xlu0 %v383, 91
        %v509 = vpop.permute.xlu0 %508
        %510 = vrot.lane.b32.xlu0 %v381, 91
        %v511 = vpop.permute.xlu0 %510
        %512 = vrot.lane.b32.xlu0 %v384, 91
        %v513 = vpop.permute.xlu0 %512
        %vm514 = vcmp.lt.s32.totalorder %v399, 91
        %v515 = vsel %vm514, %v507, %v511
        %v516 = vsel %vm514, %v509, %v513
        %v517 = vsel %vm514, %v503, %v507
        %v518 = vsel %vm514, %v505, %v509
        %v519 = vsel %vm514, %v511, %v503
        %v520 = vsel %vm514, %v513, %v505
        %521 = vrot.lane.b32.xlu0 %v379, 90
        %v522 = vpop.permute.xlu0 %521
        %523 = vrot.lane.b32.xlu0 %v382, 90
        %v524 = vpop.permute.xlu0 %523
        %525 = vrot.lane.b32.xlu0 %v380, 90
        %v526 = vpop.permute.xlu0 %525
        %527 = vrot.lane.b32.xlu0 %v383, 90
        %v528 = vpop.permute.xlu0 %527
        %529 = vrot.lane.b32.xlu0 %v381, 90
        %v530 = vpop.permute.xlu0 %529
        %531 = vrot.lane.b32.xlu0 %v384, 90
        %v532 = vpop.permute.xlu0 %531
        %vm533 = vcmp.lt.s32.totalorder %v399, 90
        %v534 = vsel %vm533, %v526, %v530
        %v535 = vsel %vm533, %v528, %v532
        %v536 = vsel %vm533, %v522, %v526
        %v537 = vsel %vm533, %v524, %v528
        %v538 = vsel %vm533, %v530, %v522
        %v539 = vsel %vm533, %v532, %v524
        %v540 = vpack.c.bf16 %v382, %v379
        %v541 = vpack.c.bf16 %v383, %v380
        %v542 = vpack.c.bf16 %v384, %v381
        %v543 = vpack.c.bf16 %v404, %v403
        %v544 = vpack.c.bf16 %v402, %v401
        %v545 = vpack.c.bf16 %v406, %v405
        %v546 = vpack.c.bf16 %v423, %v422
        %v547 = vpack.c.bf16 %v421, %v420
        %v548 = vpack.c.bf16 %v425, %v424
        %v549 = vpack.c.bf16 %v442, %v441
        %v550 = vpack.c.bf16 %v440, %v439
        %v551 = vpack.c.bf16 %v444, %v443
        %v552 = vpack.c.bf16 %v461, %v460
        %v553 = vpack.c.bf16 %v459, %v458
        %v554 = vpack.c.bf16 %v463, %v462
        %v555 = vpack.c.bf16 %v480, %v479
        %v556 = vpack.c.bf16 %v478, %v477
        %v557 = vpack.c.bf16 %v482, %v481
        %v558 = vpack.c.bf16 %v499, %v498
        %v559 = vpack.c.bf16 %v497, %v496
        %v560 = vpack.c.bf16 %v501, %v500
        %v561 = vpack.c.bf16 %v518, %v517
        %v562 = vpack.c.bf16 %v516, %v515
        %v563 = vpack.c.bf16 %v520, %v519
        %v564 = vpack.c.bf16 %v537, %v536
        %v565 = vpack.c.bf16 %v535, %v534
        %v566 = vpack.c.bf16 %v539, %v538
        %v567 = vld [vmem:[%s2] sm:$0xff]
        %v568 = vld [vmem:[%s2 + $0x8] sm:$0xff]
        %v569 = vld [vmem:[%s3] sm:$0xff]
        %v570 = vld [vmem:[%s3 + $0x8] sm:$0xff]
        %572 = vset.pattern.permute.xlu0 0
        %573 = vperm.xlu0 %572, %v569
        %v574 = vpop.permute.xlu0 %573
        %577 = vset.pattern.permute.xlu0 0
        %578 = vperm.xlu0 %577, %v570
        %v579 = vpop.permute.xlu0 %578
        %v583 = vunpack.c.l.b16 %v567
        %v584 = vunpack.c.h.b16 %v567
        %v585 = vunpack.c.l.b16 %v568
        %v586 = vunpack.c.h.b16 %v568
        %v587 = vpack.c.b16 %v585, %v583
        %v588 = vpack.c.b16 %v586, %v584
        %vm590 = vcmask 130048
        %v592 = vsel %vm590, %v588, 0
        %594 = vmatprep.subr.bf16.mxu0 %v541
        %595 = vmatpush1.bf16.msra.mxu0 %v540
        %596 = vmatprep.subr.bf16.mxu0 %v544
        %597 = vmatpush1.bf16.msra.mxu0 %v543
        %598 = vmatprep.subr.bf16.mxu0 %v547
        %599 = vmatpush1.bf16.msra.mxu0 %v546
        %600 = vmatprep.subr.bf16.mxu0 %v550
        %601 = vmatpush1.bf16.msra.mxu0 %v549
        %602 = vmatprep.subr.bf16.mxu0 %v553
        %603 = vmatpush1.bf16.msra.mxu0 %v552
        %604 = vmatprep.subr.bf16.mxu0 %v556
        %605 = vmatpush1.bf16.msra.mxu0 %v555
        %606 = vmatprep.subr.bf16.mxu0 %v559
        %607 = vmatpush1.bf16.msra.mxu0 %v558
        %608 = vmatprep.subr.bf16.mxu0 %v562
        %609 = vmatpush1.bf16.msra.mxu0 %v561
        %610 = vmatprep.subr.bf16.mxu0 %v565
        %611 = vmatpush1.bf16.msra.mxu0 %v564
        %612 = vmatprep.subr.bf16.mxu0 0
        %613 = vmatpush1.bf16.msra.mxu0 0
        %614 = vmatprep.subr.bf16.mxu0 0
        %615 = vmatpush1.bf16.msra.mxu0 0
        %616 = vmatprep.subr.bf16.mxu0 0
        %617 = vmatpush1.bf16.msra.mxu0 0
        %618 = vmatprep.subr.bf16.mxu0 0
        %619 = vmatpush1.bf16.msra.mxu0 0
        %620 = vmatprep.subr.bf16.mxu0 0
        %621 = vmatpush1.bf16.msra.mxu0 0
        %622 = vmatprep.subr.bf16.mxu0 0
        %623 = vmatpush1.bf16.msra.mxu0 0
        %624 = vmatprep.subr.bf16.mxu0 0
        %625 = vmatpush1.bf16.msra.mxu0 0
        %626 = vmatprep.mubr.bf16.mxu0 %v592
        %627 = vmatmul.mubr.bf16.gmra.mrb[0].mxu0 %v587
        %v628 = vpop.f32.mrb[0].mxu0
        %v629 = vadd.f32 %v574, %v628
        %v630 = vpop.f32.mrb[0].mxu0
        %v631 = vadd.f32 %v574, %v630
        %v632 = vpop.f32.mrb[0].mxu0
        %v633 = vadd.f32 %v579, %v632
        %v634 = vpop.f32.mrb[0].mxu0
        %v635 = vadd.f32 %v579, %v634
        %636 = vdwg.mxu0
        %637 = vmatprep.subr.bf16.mxu0 0
        %638 = vmatpush1.bf16.msra.mxu0 %v542
        %639 = vmatprep.subr.bf16.mxu0 0
        %640 = vmatpush1.bf16.msra.mxu0 %v545
        %641 = vmatprep.subr.bf16.mxu0 0
        %642 = vmatpush1.bf16.msra.mxu0 %v548
        %643 = vmatprep.subr.bf16.mxu0 0
        %644 = vmatpush1.bf16.msra.mxu0 %v551
        %645 = vmatprep.subr.bf16.mxu0 0
        %646 = vmatpush1.bf16.msra.mxu0 %v554
        %647 = vmatprep.subr.bf16.mxu0 0
        %648 = vmatpush1.bf16.msra.mxu0 %v557
        %649 = vmatprep.subr.bf16.mxu0 0
        %650 = vmatpush1.bf16.msra.mxu0 %v560
        %651 = vmatprep.subr.bf16.mxu0 0
        %652 = vmatpush1.bf16.msra.mxu0 %v563
        %653 = vmatprep.subr.bf16.mxu0 0
        %654 = vmatpush1.bf16.msra.mxu0 %v566
        %655 = vmatprep.subr.bf16.mxu0 0
        %656 = vmatpush1.bf16.msra.mxu0 0
        %657 = vmatprep.subr.bf16.mxu0 0
        %658 = vmatpush1.bf16.msra.mxu0 0
        %659 = vmatprep.subr.bf16.mxu0 0
        %660 = vmatpush1.bf16.msra.mxu0 0
        %661 = vmatprep.subr.bf16.mxu0 0
        %662 = vmatpush1.bf16.msra.mxu0 0
        %663 = vmatprep.subr.bf16.mxu0 0
        %664 = vmatpush1.bf16.msra.mxu0 0
        %665 = vmatprep.subr.bf16.mxu0 0
        %666 = vmatpush1.bf16.msra.mxu0 0
        %667 = vmatprep.subr.bf16.mxu0 0
        %668 = vmatpush1.bf16.msra.mxu0 0
        %669 = vmatprep.mubr.bf16.mxu0 %v592
        %670 = vmatmul.mubr.bf16.gmra.mrb[0].mxu0 %v587
        %v671 = vpop.f32.mrb[0].mxu0
        %v672 = vadd.f32 %v574, %v671
        %v673 = vpop.f32.mrb[0].mxu0
        %v674 = vpop.f32.mrb[0].mxu0
        %v675 = vadd.f32 %v579, %v674
        %v676 = vpop.f32.mrb[0].mxu0
        %677 = vdwg.mxu0
        %v678 = vmax.f32 %v629, 0.0
        %v679 = vmax.f32 %v631, 0.0
        %v680 = vmax.f32 %v672, 0.0
        %v681 = vmax.f32 %v633, 0.0
        %v682 = vmax.f32 %v635, 0.0
        %v683 = vmax.f32 %v675, 0.0
        %v685 = vlaneseq
        %v686 = vshrl.u32 %v685, 7
        %v687 = vsub.s32 0, %v686
        %v688 = vrot.slane %v385, %v687
        %v689 = vlaneseq
        %v690 = vshrl.u32 %v689, 7
        %v691 = vsub.s32 1, %v690
        %v692 = vrot.slane %v385, %v691
        %v693 = vlaneseq
        %v694 = vshrl.u32 %v693, 7
        %v695 = vsub.s32 2, %v694
        %v696 = vrot.slane %v385, %v695
        %v700 = vmul.f32 %v678, %v688
        %v701 = vmul.f32 %v679, %v692
        %v702 = vmul.f32 %v680, %v696
        %v703 = vmul.f32 %v681, %v688
        %v704 = vmul.f32 %v682, %v692
        %v705 = vmul.f32 %v683, %v696
        %706 = vrot.lane.b32.xlu0 %v700, 19
        %v707 = vpop.permute.xlu0 %706
        %708 = vrot.lane.b32.xlu0 %v703, 19
        %v709 = vpop.permute.xlu0 %708
        %710 = vrot.lane.b32.xlu0 %v701, 19
        %v711 = vpop.permute.xlu0 %710
        %712 = vrot.lane.b32.xlu0 %v704, 19
        %v713 = vpop.permute.xlu0 %712
        %714 = vrot.lane.b32.xlu0 %v702, 19
        %v715 = vpop.permute.xlu0 %714
        %716 = vrot.lane.b32.xlu0 %v705, 19
        %v717 = vpop.permute.xlu0 %716
        %vm718 = vcmp.lt.s32.totalorder %v399, 19
        %v719 = vsel %vm718, %v711, %v715
        %v720 = vsel %vm718, %v713, %v717
        %v721 = vsel %vm718, %v707, %v711
        %v722 = vsel %vm718, %v709, %v713
        %v723 = vsel %vm718, %v715, %v707
        %v724 = vsel %vm718, %v717, %v709
        %725 = vrot.lane.b32.xlu0 %v700, 18
        %v726 = vpop.permute.xlu0 %725
        %727 = vrot.lane.b32.xlu0 %v703, 18
        %v728 = vpop.permute.xlu0 %727
        %729 = vrot.lane.b32.xlu0 %v701, 18
        %v730 = vpop.permute.xlu0 %729
        %731 = vrot.lane.b32.xlu0 %v704, 18
        %v732 = vpop.permute.xlu0 %731
        %733 = vrot.lane.b32.xlu0 %v702, 18
        %v734 = vpop.permute.xlu0 %733
        %735 = vrot.lane.b32.xlu0 %v705, 18
        %v736 = vpop.permute.xlu0 %735
        %vm737 = vcmp.lt.s32.totalorder %v399, 18
        %v738 = vsel %vm737, %v730, %v734
        %v739 = vsel %vm737, %v732, %v736
        %v740 = vsel %vm737, %v726, %v730
        %v741 = vsel %vm737, %v728, %v732
        %v742 = vsel %vm737, %v734, %v726
        %v743 = vsel %vm737, %v736, %v728
        %744 = vrot.lane.b32.xlu0 %v700, 17
        %v745 = vpop.permute.xlu0 %744
        %746 = vrot.lane.b32.xlu0 %v703, 17
        %v747 = vpop.permute.xlu0 %746
        %748 = vrot.lane.b32.xlu0 %v701, 17
        %v749 = vpop.permute.xlu0 %748
        %750 = vrot.lane.b32.xlu0 %v704, 17
        %v751 = vpop.permute.xlu0 %750
        %752 = vrot.lane.b32.xlu0 %v702, 17
        %v753 = vpop.permute.xlu0 %752
        %754 = vrot.lane.b32.xlu0 %v705, 17
        %v755 = vpop.permute.xlu0 %754
        %vm756 = vcmp.lt.s32.totalorder %v399, 17
        %v757 = vsel %vm756, %v749, %v753
        %v758 = vsel %vm756, %v751, %v755
        %v759 = vsel %vm756, %v745, %v749
        %v760 = vsel %vm756, %v747, %v751
        %v761 = vsel %vm756, %v753, %v745
        %v762 = vsel %vm756, %v755, %v747
        %763 = vrot.lane.b32.xlu0 %v700, 1
        %v764 = vpop.permute.xlu0 %763
        %765 = vrot.lane.b32.xlu0 %v703, 1
        %v766 = vpop.permute.xlu0 %765
        %767 = vrot.lane.b32.xlu0 %v701, 1
        %v768 = vpop.permute.xlu0 %767
        %769 = vrot.lane.b32.xlu0 %v704, 1
        %v770 = vpop.permute.xlu0 %769
        %771 = vrot.lane.b32.xlu0 %v702, 1
        %v772 = vpop.permute.xlu0 %771
        %773 = vrot.lane.b32.xlu0 %v705, 1
        %v774 = vpop.permute.xlu0 %773
        %vm775 = vcmp.lt.s32.totalorder %v399, 1
        %v776 = vsel %vm775, %v768, %v772
        %v777 = vsel %vm775, %v770, %v774
        %v778 = vsel %vm775, %v764, %v768
        %v779 = vsel %vm775, %v766, %v770
        %v780 = vsel %vm775, %v772, %v764
        %v781 = vsel %vm775, %v774, %v766
        %782 = vrot.lane.b32.xlu0 %v700, 127
        %v783 = vpop.permute.xlu0 %782
        %784 = vrot.lane.b32.xlu0 %v703, 127
        %v785 = vpop.permute.xlu0 %784
        %786 = vrot.lane.b32.xlu0 %v701, 127
        %v787 = vpop.permute.xlu0 %786
        %788 = vrot.lane.b32.xlu0 %v704, 127
        %v789 = vpop.permute.xlu0 %788
        %790 = vrot.lane.b32.xlu0 %v702, 127
        %v791 = vpop.permute.xlu0 %790
        %792 = vrot.lane.b32.xlu0 %v705, 127
        %v793 = vpop.permute.xlu0 %792
        %v794 = vsel %vm400, %v787, %v791
        %v795 = vsel %vm400, %v789, %v793
        %v796 = vsel %vm400, %v783, %v787
        %v797 = vsel %vm400, %v785, %v789
        %v798 = vsel %vm400, %v791, %v783
        %v799 = vsel %vm400, %v793, %v785
        %800 = vrot.lane.b32.xlu0 %v700, 111
        %v801 = vpop.permute.xlu0 %800
        %802 = vrot.lane.b32.xlu0 %v703, 111
        %v803 = vpop.permute.xlu0 %802
        %804 = vrot.lane.b32.xlu0 %v701, 111
        %v805 = vpop.permute.xlu0 %804
        %806 = vrot.lane.b32.xlu0 %v704, 111
        %v807 = vpop.permute.xlu0 %806
        %808 = vrot.lane.b32.xlu0 %v702, 111
        %v809 = vpop.permute.xlu0 %808
        %810 = vrot.lane.b32.xlu0 %v705, 111
        %v811 = vpop.permute.xlu0 %810
        %vm812 = vcmp.lt.s32.totalorder %v399, 111
        %v813 = vsel %vm812, %v805, %v809
        %v814 = vsel %vm812, %v807, %v811
        %v815 = vsel %vm812, %v801, %v805
        %v816 = vsel %vm812, %v803, %v807
        %v817 = vsel %vm812, %v809, %v801
        %v818 = vsel %vm812, %v811, %v803
        %819 = vrot.lane.b32.xlu0 %v700, 110
        %v820 = vpop.permute.xlu0 %819
        %821 = vrot.lane.b32.xlu0 %v703, 110
        %v822 = vpop.permute.xlu0 %821
        %823 = vrot.lane.b32.xlu0 %v701, 110
        %v824 = vpop.permute.xlu0 %823
        %825 = vrot.lane.b32.xlu0 %v704, 110
        %v826 = vpop.permute.xlu0 %825
        %827 = vrot.lane.b32.xlu0 %v702, 110
        %v828 = vpop.permute.xlu0 %827
        %829 = vrot.lane.b32.xlu0 %v705, 110
        %v830 = vpop.permute.xlu0 %829
        %v831 = vsel %vm438, %v824, %v828
        %v832 = vsel %vm438, %v826, %v830
        %v833 = vsel %vm438, %v820, %v824
        %v834 = vsel %vm438, %v822, %v826
        %v835 = vsel %vm438, %v828, %v820
        %v836 = vsel %vm438, %v830, %v822
        %837 = vrot.lane.b32.xlu0 %v700, 109
        %v838 = vpop.permute.xlu0 %837
        %839 = vrot.lane.b32.xlu0 %v703, 109
        %v840 = vpop.permute.xlu0 %839
        %841 = vrot.lane.b32.xlu0 %v701, 109
        %v842 = vpop.permute.xlu0 %841
        %843 = vrot.lane.b32.xlu0 %v704, 109
        %v844 = vpop.permute.xlu0 %843
        %845 = vrot.lane.b32.xlu0 %v702, 109
        %v846 = vpop.permute.xlu0 %845
        %847 = vrot.lane.b32.xlu0 %v705, 109
        %v848 = vpop.permute.xlu0 %847
        %v849 = vsel %vm457, %v842, %v846
        %v850 = vsel %vm457, %v844, %v848
        %v851 = vsel %vm457, %v838, %v842
        %v852 = vsel %vm457, %v840, %v844
        %v853 = vsel %vm457, %v846, %v838
        %v854 = vsel %vm457, %v848, %v840
        %v855 = vpack.c.bf16 %v724, %v723
        %v856 = vpack.c.bf16 %v722, %v721
        %v857 = vpack.c.bf16 %v720, %v719
        %v858 = vpack.c.bf16 %v743, %v742
        %v859 = vpack.c.bf16 %v741, %v740
        %v860 = vpack.c.bf16 %v739, %v738
        %v861 = vpack.c.bf16 %v762, %v761
        %v862 = vpack.c.bf16 %v760, %v759
        %v863 = vpack.c.bf16 %v758, %v757
        %v864 = vpack.c.bf16 %v781, %v780
        %v865 = vpack.c.bf16 %v779, %v778
        %v866 = vpack.c.bf16 %v777, %v776
        %v867 = vpack.c.bf16 %v703, %v700
        %v868 = vpack.c.bf16 %v704, %v701
        %v869 = vpack.c.bf16 %v705, %v702
        %v870 = vpack.c.bf16 %v797, %v796
        %v871 = vpack.c.bf16 %v795, %v794
        %v872 = vpack.c.bf16 %v799, %v798
        %v873 = vpack.c.bf16 %v816, %v815
        %v874 = vpack.c.bf16 %v814, %v813
        %v875 = vpack.c.bf16 %v818, %v817
        %v876 = vpack.c.bf16 %v834, %v833
        %v877 = vpack.c.bf16 %v832, %v831
        %v878 = vpack.c.bf16 %v836, %v835
        %v879 = vpack.c.bf16 %v852, %v851
        %v880 = vpack.c.bf16 %v850, %v849
        %v881 = vpack.c.bf16 %v854, %v853
        %v882 = vld [vmem:[%s4] sm:$0xff]
        %v883 = vld [vmem:[%s4 + $0x8] sm:$0xff]
        %v884 = vld [vmem:[%s5] sm:$0xff]
        %v885 = vld [vmem:[%s5 + $0x8] sm:$0xff]
        %887 = vset.pattern.permute.xlu0 0
        %888 = vperm.xlu0 %887, %v884
        %v889 = vpop.permute.xlu0 %888
        %892 = vset.pattern.permute.xlu0 0
        %893 = vperm.xlu0 %892, %v885
        %v894 = vpop.permute.xlu0 %893
        %v898 = vunpack.c.l.b16 %v882
        %v899 = vunpack.c.h.b16 %v882
        %v900 = vunpack.c.l.b16 %v883
        %v901 = vunpack.c.h.b16 %v883
        %v902 = vpack.c.b16 %v900, %v898
        %v903 = vpack.c.b16 %v901, %v899
        %v906 = vsel %vm590, %v903, 0
        %908 = vmatprep.subr.bf16.mxu0 %v856
        %909 = vmatpush1.bf16.msra.mxu0 %v855
        %910 = vmatprep.subr.bf16.mxu0 %v859
        %911 = vmatpush1.bf16.msra.mxu0 %v858
        %912 = vmatprep.subr.bf16.mxu0 %v862
        %913 = vmatpush1.bf16.msra.mxu0 %v861
        %914 = vmatprep.subr.bf16.mxu0 %v865
        %915 = vmatpush1.bf16.msra.mxu0 %v864
        %916 = vmatprep.subr.bf16.mxu0 %v868
        %917 = vmatpush1.bf16.msra.mxu0 %v867
        %918 = vmatprep.subr.bf16.mxu0 %v871
        %919 = vmatpush1.bf16.msra.mxu0 %v870
        %920 = vmatprep.subr.bf16.mxu0 %v874
        %921 = vmatpush1.bf16.msra.mxu0 %v873
        %922 = vmatprep.subr.bf16.mxu0 %v877
        %923 = vmatpush1.bf16.msra.mxu0 %v876
        %924 = vmatprep.subr.bf16.mxu0 %v880
        %925 = vmatpush1.bf16.msra.mxu0 %v879
        %926 = vmatprep.subr.bf16.mxu0 0
        %927 = vmatpush1.bf16.msra.mxu0 0
        %928 = vmatprep.subr.bf16.mxu0 0
        %929 = vmatpush1.bf16.msra.mxu0 0
        %930 = vmatprep.subr.bf16.mxu0 0
        %931 = vmatpush1.bf16.msra.mxu0 0
        %932 = vmatprep.subr.bf16.mxu0 0
        %933 = vmatpush1.bf16.msra.mxu0 0
        %934 = vmatprep.subr.bf16.mxu0 0
        %935 = vmatpush1.bf16.msra.mxu0 0
        %936 = vmatprep.subr.bf16.mxu0 0
        %937 = vmatpush1.bf16.msra.mxu0 0
        %938 = vmatprep.subr.bf16.mxu0 0
        %939 = vmatpush1.bf16.msra.mxu0 0
        %940 = vmatprep.mubr.bf16.mxu0 %v906
        %941 = vmatmul.mubr.bf16.gmra.mrb[0].mxu0 %v902
        %v942 = vpop.f32.mrb[0].mxu0
        %v943 = vadd.f32 %v889, %v942
        %v944 = vpop.f32.mrb[0].mxu0
        %v945 = vadd.f32 %v889, %v944
        %v946 = vpop.f32.mrb[0].mxu0
        %v947 = vadd.f32 %v894, %v946
        %v948 = vpop.f32.mrb[0].mxu0
        %v949 = vadd.f32 %v894, %v948
        %950 = vdwg.mxu0
        %951 = vmatprep.subr.bf16.mxu0 0
        %952 = vmatpush1.bf16.msra.mxu0 %v857
        %953 = vmatprep.subr.bf16.mxu0 0
        %954 = vmatpush1.bf16.msra.mxu0 %v860
        %955 = vmatprep.subr.bf16.mxu0 0
        %956 = vmatpush1.bf16.msra.mxu0 %v863
        %957 = vmatprep.subr.bf16.mxu0 0
        %958 = vmatpush1.bf16.msra.mxu0 %v866
        %959 = vmatprep.subr.bf16.mxu0 0
        %960 = vmatpush1.bf16.msra.mxu0 %v869
        %961 = vmatprep.subr.bf16.mxu0 0
        %962 = vmatpush1.bf16.msra.mxu0 %v872
        %963 = vmatprep.subr.bf16.mxu0 0
        %964 = vmatpush1.bf16.msra.mxu0 %v875
        %965 = vmatprep.subr.bf16.mxu0 0
        %966 = vmatpush1.bf16.msra.mxu0 %v878
        %967 = vmatprep.subr.bf16.mxu0 0
        %968 = vmatpush1.bf16.msra.mxu0 %v881
        %969 = vmatprep.subr.bf16.mxu0 0
        %970 = vmatpush1.bf16.msra.mxu0 0
        %971 = vmatprep.subr.bf16.mxu0 0
        %972 = vmatpush1.bf16.msra.mxu0 0
        %973 = vmatprep.subr.bf16.mxu0 0
        %974 = vmatpush1.bf16.msra.mxu0 0
        %975 = vmatprep.subr.bf16.mxu0 0
        %976 = vmatpush1.bf16.msra.mxu0 0
        %977 = vmatprep.subr.bf16.mxu0 0
        %978 = vmatpush1.bf16.msra.mxu0 0
        %979 = vmatprep.subr.bf16.mxu0 0
        %980 = vmatpush1.bf16.msra.mxu0 0
        %981 = vmatprep.subr.bf16.mxu0 0
        %982 = vmatpush1.bf16.msra.mxu0 0
        %983 = vmatprep.mubr.bf16.mxu0 %v906
        %984 = vmatmul.mubr.bf16.gmra.mrb[0].mxu0 %v902
        %v985 = vpop.f32.mrb[0].mxu0
        %v986 = vadd.f32 %v889, %v985
        %v987 = vpop.f32.mrb[0].mxu0
        %v988 = vpop.f32.mrb[0].mxu0
        %v989 = vadd.f32 %v894, %v988
        %v990 = vpop.f32.mrb[0].mxu0
        %991 = vdwg.mxu0
        %v992 = vmul.f32 %v943, %v688
        %v993 = vmul.f32 %v945, %v692
        %v994 = vmul.f32 %v986, %v696
        %v995 = vmul.f32 %v947, %v688
        %v996 = vmul.f32 %v949, %v692
        %v997 = vmul.f32 %v989, %v696
        %v998 = vadd.f32 %v992, %v993
        %v999 = vadd.f32 %v998, %v994
        %1000 = vadd.xlane.f32.xlu0 %v999
        %v1001 = vpop.xlane.xlu0 %1000
        %v1002 = vadd.f32 %v995, %v996
        %v1003 = vadd.f32 %v1002, %v997
        %1004 = vadd.xlane.f32.xlu0 %v1003
        %v1005 = vpop.xlane.xlu0 %1004
        %v1006 = vmul.f32 %v1001, 0.00390625
        %v1007 = vmul.f32 %v1005, 0.00390625
        %v1008 = vld [vmem:[%s6] sm:$0xff]
        %v1009 = vld [vmem:[%s6 + $0x8] sm:$0xff]
        %v1010 = vmul.f32 %v1008, %v1006
        %v1011 = vmul.f32 %v1009, %v1007
        %vm1012 = vcmask 31744
        %v1013 = vsel %vm1012, %v1010, 0.0
        %v1014 = vsel %vm1012, %v1011, 0.0
        %v1015 = vadd.f32 %v1013, %v1014
        %v1016 = vrot.slane %v1015, 4
        %v1017 = vadd.f32 %v1015, %v1016
        %v1018 = vrot.slane %v1017, 2
        %v1019 = vadd.f32 %v1017, %v1018
        %v1020 = vrot.slane %v1019, 1
        %v1021 = vadd.f32 %v1019, %v1020
        %v1022 = vld [vmem:[%s7] sm:$0x1]
        %v1023 = vadd.f32 %v1021, %v1022
        %v1024 = vmax.f32 %v1023, 0.0
        %v1025 = vld [vmem:[%s8] sm:$0xff]
        %v1026 = vld [vmem:[%s8 + $0x8] sm:$0xff]
        %v1027 = vlaneseq
        %v1028 = vshrl.u32 %v1027, 7
        %v1029 = vsub.s32 0, %v1028
        %v1030 = vrot.slane %v1024, %v1029
        %v1031 = vmul.f32 %v1025, %v1030
        %v1032 = vmul.f32 %v1026, %v1030
        %v1033 = vsel %vm1012, %v1031, 0.0
        %1034 = vadd.xlane.f32.xlu0 %v1033
        %v1035 = vpop.xlane.xlu0 %1034
        %v1036 = vsel %vm1012, %v1032, 0.0
        %1037 = vadd.xlane.f32.xlu0 %v1036
        %v1038 = vpop.xlane.xlu0 %1037
        %v1039 = vld [vmem:[%s9] sm:$0xff]
        %v1040 = vld [vmem:[%s9 + $0x8] sm:$0xff]
        %v1041 = vadd.f32 %v1035, %v1039
        %v1042 = vadd.f32 %v1038, %v1040
        %v1043 = vxor.u32 %v1041, 2147483648
        %v1044 = vxor.u32 %v1042, 2147483648
        %v1045 = vmul.f32 %v1043, 1.442695
        %v1046 = vpow.pop %v1045
        %v1047 = vmul.f32 %v1044, 1.442695
        %v1048 = vpow.pop %v1047
        %v1049 = vadd.f32 %v1046, 1.0
        %v1050 = vadd.f32 %v1048, 1.0
        %v1051 = vrcp.pop %v1049
        %v1052 = vmul.f32 1.0, %v1051
        %v1053 = vrcp.pop %v1050
        %v1054 = vmul.f32 1.0, %v1053
        %1056 = vset.pattern.permute.xlu0 0
        %1057 = vperm.xlu0 %1056, %v1052
        %v1058 = vpop.permute.xlu0 %1057
        %1061 = vset.pattern.permute.xlu0 0
        %1062 = vperm.xlu0 %1061, %v1054
        %v1063 = vpop.permute.xlu0 %1062
        %v1065 = vmul.f32 %v943, %v1058
        %v1066 = vmul.f32 %v945, %v1058
        %v1067 = vmul.f32 %v986, %v1058
        %v1068 = vmul.f32 %v947, %v1063
        %v1069 = vmul.f32 %v949, %v1063
        %v1070 = vmul.f32 %v989, %v1063
        %v1071 = vadd.f32 %v1065, %v460
        %v1072 = vadd.f32 %v1066, %v458
        %v1073 = vadd.f32 %v1067, %v462
        %v1074 = vadd.f32 %v1068, %v461
        %v1075 = vadd.f32 %v1069, %v459
        %v1076 = vadd.f32 %v1070, %v463
        %1077 = vst [vmem:[%s377] sm:$0xff] %v1071
        %1078 = vst [vmem:[%s377 + $0x8] sm:$0xff] %v1072
        %1079 = vst [vmem:[%s377 + $0x10] sm:$0xff] %v1073
        %1080 = vst [vmem:[%s377 + $0x18] sm:$0xff] %v1074
        %1081 = vst [vmem:[%s377 + $0x20] sm:$0xff] %v1075
        %1082 = vst [vmem:[%s377 + $0x28] sm:$0xff] %v1076
        %s1083 = sand.u32 %s250, 1
        %s1084 = scalar_lea.sflag [#allocation4], %s1083
        %s1085 = sand.u32 %s250, 1
        %s1086 = smul.addr %s1085, 48
        %s1087 = scalar_lea.vmem [#allocation5], %s1086
        // Predicated region
        $region65: #{tpu_custom_call.1} parent=59 // pred_check
          %p1088 = pneg %p260
        $region66: #{tpu_custom_call.1} parent=59 // pred_check_branch
          %1090 = sbr.rel (%p1088) target = $region68
        $region67: #{tpu_custom_call.1} parent=59 // pred_region
          %s1092 = ssub.s32 768, 768
          %1093 = vsyncadd %s1084, %s1092
          %s1094 = smul.addr %s27, 6
          %s1095 = smul.addr %s1094, 128
          %s1096 = scalar_lea.hbm %s10, %s1095
          %s1097 = sshll.u32 %s1087, 4
          %s1098 = int_to_ptr.vmem [resolvable:$true] %s1097
          %1103 = dma.vmem_to_hbm [thread:$0]  %s1098, 768, %s1096, %s1084, 384, 384, 24
        $region68: #{tpu_custom_call.1} parent=59 // pred_fallthru
          _
      $region60: #{tpu_custom_call.1} parent=5 // pred_fallthru
        _
      %p1104 = scmp.le.s32.totalorder 2, %s22
      // Predicated region
      $region69: #{tpu_custom_call.1} parent=5 // pred_check
        %p1105 = pneg %p1104
      $region70: #{tpu_custom_call.1} parent=5 // pred_check_branch
        %1107 = sbr.rel (%p1105) target = $region72
      $region71: #{tpu_custom_call.1} parent=5 // pred_region
        %s1108 = ssub.s32 %s22, 2
        // Predicated region
        $region73: #{tpu_custom_call.1} parent=71 // pred_check
          %p1109 = pneg %p266
        $region74: #{tpu_custom_call.1} parent=71 // pred_check_branch
          %1111 = sbr.rel (%p1109) target = $region76
        $region75: #{tpu_custom_call.1} parent=71 // pred_region
          %s1112 = sand.u32 %s251, 1
          %s1113 = scalar_lea.sflag [#allocation4], %s1112
          %s1114 = sand.u32 %s251, 1
          %s1115 = smul.addr %s1114, 48
          %s1116 = scalar_lea.vmem [#allocation5], %s1115
          %1117 = dma.done %s1113, 768
        $region76: #{tpu_custom_call.1} parent=71 // pred_fallthru
          _
      $region72: #{tpu_custom_call.1} parent=5 // pred_fallthru
        _
    $region6: #{tpu_custom_call.1} parent=1 // loop_footer
      %s26 = sadd.s32 1, %s22
    $region7: #{tpu_custom_call.1} parent=1 // loop_footer_branch
      %21 = sbr.rel target = $region3
    $region8: #{tpu_custom_call.1} parent=1 // loop_exit
      _
    %1118 = vsyncpa [#allocation3], 1
    %s1119 = scalar_lea.sflag [#allocation3], 1
    %1120 = vsyncpa %s1119, 1
    %1121 = vsyncpa [#allocation4], 1
    %s1122 = scalar_lea.sflag [#allocation4], 1
    %1123 = vsyncpa %s1122, 1

</llo_original>
